<compile_context>
chip_gen: v5e
topology: v5e:2x2
jax: 0.10.0
libtpu: 0.0.40
codegen_flags: <defaults>
</compile_context>

<pallas_src>
import numpy as np
import jax
import jax.numpy as jnp
from jax.experimental import pallas as pl
from jax.experimental.pallas import tpu as pltpu

_ROI_BUCKET = 8   # ROI-count bucket -> static kernel shapes, no data-driven recompiles


# -----------------------------------------------------------------------------
# Host-side (numpy) construction of the pool-folded roi_align weight operator.
# -----------------------------------------------------------------------------
def _axis_weights(start, bin_size, grid_n, P, S):
    """Separable roi_align bilinear weights along one axis, vectorized over ROIs.

    Returns W (N, P, S) with  sum_s W[r, p, s] * feat[s]  equal to the average
    over the adaptive sample grid of torchvision's bilinear_interpolate along
    this axis for ROI r, output bin p (out-of-range samples contribute 0).
    """
    start = np.asarray(start, np.float64)
    bin_size = np.asarray(bin_size, np.float64)
    grid_n = np.asarray(grid_n, np.float64)
    N = start.shape[0]
    G = int(max(1.0, grid_n.max()))

    st = start[:, None, None]
    bs = bin_size[:, None, None]
    gn = grid_n[:, None, None]
    p = np.arange(P, dtype=np.float64)[None, :, None]
    g = np.arange(G, dtype=np.float64)[None, None, :]

    coord = st + p * bs + (g + 0.5) * bs / gn                    # (N, P, G)
    valid = (coord >= -1.0) & (coord <= float(S)) & (g < gn)

    c = np.maximum(coord, 0.0)
    low = np.floor(c)
    at_edge = low >= (S - 1)
    low = np.where(at_edge, float(S - 1), low)
    c = np.where(at_edge, low, c)
    l = c - low                      # "ly" / "lx" in torchvision
    h = 1.0 - l                      # "hy" / "hx"
    low_i = low.astype(np.int64)
    high_i = np.where(at_edge, S - 1, low_i + 1)

    w = np.zeros((N, P, G, S), np.float64)
    n_i, p_i, g_i = np.indices((N, P, G))
    np.add.at(w, (n_i, p_i, g_i, low_i), np.where(valid, h, 0.0))
    np.add.at(w, (n_i, p_i, g_i, high_i), np.where(valid, l, 0.0))
    return w.sum(axis=2) / gn                                    # (N, P, S)


def _pooled_roi_operator(coords, batch_idx, B, H, W, PH, PW, n_pad):
    """Combined (roi_align + avg_pool2d(2,1) + batch-select) linear operator.

    Returns W2 of shape (B*H*W, n_pad*(PH-1)*(PW-1)) such that
        feat (C, B*H*W) @ W2  ==  pooled roi_align features, laid out
        column = r*(PH-1)*(PW-1) + p*(PW-1) + q.
    Padded ROI slots (>= len(coords)) get all-zero columns.
    """
    N = coords.shape[0]
    x1, y1, x2, y2 = coords[:, 0], coords[:, 1], coords[:, 2], coords[:, 3]
    roi_w = np.maximum(x2 - x1, 1.0)
    roi_h = np.maximum(y2 - y1, 1.0)
    gh = np.maximum(np.ceil(roi_h / PH), 1.0)     # adaptive sampling_ratio = -1
    gw = np.maximum(np.ceil(roi_w / PW), 1.0)

    wy = _axis_weights(y1, roi_h / PH, gh, PH, H)                # (N, PH, H)
    wx = _axis_weights(x1, roi_w / PW, gw, PW, W)                # (N, PW, W)
    # fold avg_pool2d(kernel_size=2, stride=1): 0.25 * (2x2 window sum)
    wy = 0.5 * (wy[:, :-1, :] + wy[:, 1:, :])                    # (N, PH-1, H)
    wx = 0.5 * (wx[:, :-1, :] + wx[:, 1:, :])                    # (N, PW-1, W)

    phm1, pwm1 = PH - 1, PW - 1
    w2 = np.zeros((B, H, W, n_pad, phm1, pwm1), np.float64)
    for r in range(N):
        w2[int(batch_idx[r]), :, :, r] = np.einsum('ph,qw->hwpq', wy[r], wx[r])
    return w2.reshape(B * H * W, n_pad * phm1 * pwm1).astype(np.float32)


# -----------------------------------------------------------------------------
# Pallas kernel: one well-shaped MXU matmul per FPN level.
# -----------------------------------------------------------------------------
def _roi_matmul_kernel(feat_ref, w_ref, out_ref):
    # feat_ref: (C, B*H*W); w_ref: (B*H*W, Npad*(PH-1)*(PW-1)); out_ref matches.
    out_ref[...] = jnp.dot(feat_ref[...], w_ref[...],
                           preferred_element_type=jnp.float32)


def _roi_level_pallas(feat_cf, w2):
    C, K = feat_cf.shape
    _, M = w2.shape
    return pl.pallas_call(
        _roi_matmul_kernel,
        out_shape=jax.ShapeDtypeStruct((C, M), jnp.float32),
        grid=(1,),
        in_specs=[
            pl.BlockSpec((C, K), lambda i: (0, 0)),   # whole level's features
            pl.BlockSpec((K, M), lambda i: (0, 0)),   # pool-folded ROI operator
        ],
        out_specs=pl.BlockSpec((C, M), lambda i: (0, 0)),
        compiler_params=pltpu.CompilerParams(
            dimension_semantics=("arbitrary",)),
    )(feat_cf, w2)


# -----------------------------------------------------------------------------
# Forward pass (mirrors RoIAlignMatrixNet.forward).
# -----------------------------------------------------------------------------
def roi_align_matrixnet(features, rois, aligned_height, aligned_width):
    """features: list of (B, C, H_i, W_i) arrays (torch NCHW layout).
    rois: (B, R, 7) numpy; column 6 = FPN level, columns 1:5 = x1, y1, x2, y2."""
    # torchvision output_size=(h, w) receives (aligned_width, aligned_height)
    PH = int(aligned_width)      # pooled height
    PW = int(aligned_height)     # pooled width
    phm1, pwm1 = PH - 1, PW - 1
    B, C, H0, W0 = (int(s) for s in features[0].shape)
    L = len(features)
    rois_np = np.asarray(rois, dtype=np.float32)

    per_batch = [[] for _ in range(B)]
    for i in range(L - 1, -1, -1):                     # high level -> level 0
        Hi, Wi = int(features[i].shape[2]), int(features[i].shape[3])
        coords_list, batch_list, counts = [], [], []
        for b in range(B):
            keep = rois_np[b][:, 6] == i
            nb = int(keep.sum())
            counts.append(nb)
            if nb == 0:
                continue
            coords = rois_np[b][keep][:, 1:5].astype(np.float64).copy()
            coords[:, [0, 2]] *= Wi / (W0 * 8)         # resize_rois
            coords[:, [1, 3]] *= Hi / (H0 * 8)
            coords_list.append(coords)
            batch_list.append(np.full((nb,), b, np.int64))
        if not coords_list:
            continue
        coords = np.concatenate(coords_list, axis=0)
        batch_idx = np.concatenate(batch_list, axis=0)
        N = coords.shape[0]
        n_pad = max(_ROI_BUCKET, int(np.ceil(N / _ROI_BUCKET)) * _ROI_BUCKET)

        w2 = _pooled_roi_operator(coords, batch_idx, B, Hi, Wi, PH, PW, n_pad)
        # (B, C, H, W) -> (C, B*H*W): channels on sublanes, pixels lane-dense.
        feat_cf = jnp.transpose(features[i], (1, 0, 2, 3)).reshape(C, B * Hi * Wi)

        out = _roi_level_pallas(feat_cf, jnp.asarray(w2))    # (C, n_pad*phm1*pwm1)
        out = jnp.transpose(out.reshape(C, n_pad, phm1, pwm1), (1, 0, 2, 3))[:N]

        off = 0                                     # split rows back per batch
        for b in range(B):
            if counts[b] == 0:
                continue
            per_batch[b].append(out[off:off + counts[b]])
            off += counts[b]

    pooled = jnp.stack([jnp.concatenate(blocks, axis=0) for blocks in per_batch],
                       axis=0)                      # (B, n_roi, C, PH-1, PW-1)
    bsz, n_roi, c, h, w = pooled.shape
    return pooled.reshape(bsz * n_roi, -1), bsz, n_roi, c, h, w


# -----------------------------------------------------------------------------
# Pure-numpy reference (direct torchvision-style sampling) for self-check.
# -----------------------------------------------------------------------------
def _bilinear(feat, y, x):
    C, H, W = feat.shape
    if y < -1.0 or y > H or x < -1.0 or x > W:
        return np.zeros((C,), np.float64)
    y = max(y, 0.0)
    x = max(x, 0.0)
    yl, xl = int(np.floor(y)), int(np.floor(x))
    if yl >= H - 1:
        yh = yl = H - 1
        y = float(yl)
    else:
        yh = yl + 1
    if xl >= W - 1:
        xh = xl = W - 1
        x = float(xl)
    else:
        xh = xl + 1
    ly, lx = y - yl, x - xl
    hy, hx = 1.0 - ly, 1.0 - lx
    return (hy * hx * feat[:, yl, xl] + hy * lx * feat[:, yl, xh]
            + ly * hx * feat[:, yh, xl] + ly * lx * feat[:, yh, xh])


def _roi_align_ref(feat, boxes, PH, PW):
    C, H, W = feat.shape
    out = np.zeros((boxes.shape[0], C, PH, PW), np.float64)
    for r, (x1, y1, x2, y2) in enumerate(boxes):
        rw, rh = max(x2 - x1, 1.0), max(y2 - y1, 1.0)
        bh, bw = rh / PH, rw / PW
        gh, gw = int(max(np.ceil(rh / PH), 1)), int(max(np.ceil(rw / PW), 1))
        for p in range(PH):
            for q in range(PW):
                acc = np.zeros((C,), np.float64)
                for iy in range(gh):
                    yy = y1 + p * bh + (iy + 0.5) * bh / gh
                    for ix in range(gw):
                        xx = x1 + q * bw + (ix + 0.5) * bw / gw
                        acc += _bilinear(feat, yy, xx)
                out[r, :, p, q] = acc / (gh * gw)
    return out


def _reference_forward(features_np, rois_np, aligned_height, aligned_width):
    PH, PW = int(aligned_width), int(aligned_height)
    B, C, H0, W0 = features_np[0].shape
    L = len(features_np)
    per_batch = []
    for b in range(B):
        blocks = []
        for i in range(L - 1, -1, -1):
            keep = rois_np[b][:, 6] == i
            if keep.sum() == 0:
                continue
            Hi, Wi = features_np[i].shape[2], features_np[i].shape[3]
            coords = rois_np[b][keep][:, 1:5].astype(np.float64).copy()
            coords[:, [0, 2]] *= Wi / (W0 * 8)
            coords[:, [1, 3]] *= Hi / (H0 * 8)
            ra = _roi_align_ref(features_np[i][b].astype(np.float64), coords, PH, PW)
            blocks.append(0.25 * (ra[..., :-1, :-1] + ra[..., 1:, :-1]
                                  + ra[..., :-1, 1:] + ra[..., 1:, 1:]))
        per_batch.append(np.concatenate(blocks, axis=0)[None])
    pooled = np.concatenate(per_batch, axis=0)
    return pooled.reshape(pooled.shape[0] * pooled.shape[1], -1)


if __name__ == "__main__":
    key = jax.random.PRNGKey(0)
    B, C = 2, 4
    level_shapes = [(16, 16), (8, 8), (4, 4)]            # FPN-style pyramid
    keys = jax.random.split(key, len(level_shapes))
    features = [jax.random.normal(keys[i], (B, C, h, w), jnp.float32)
                for i, (h, w) in enumerate(level_shapes)]

    # rois: (B, R, 7) rows = [batch_idx, x1, y1, x2, y2, score, level]
    R = 6
    rng = np.random.RandomState(0)
    rois_np = np.zeros((B, R, 7), np.float32)
    for b in range(B):
        for r in range(R):
            x1 = rng.uniform(0.0, 70.0)
            y1 = rng.uniform(0.0, 70.0)
            bw = rng.uniform(8.0, 50.0)
            bh = rng.uniform(8.0, 50.0)
            lvl = r % len(level_shapes)
            rois_np[b, r] = [b, x1, y1, x1 + bw, y1 + bh, 1.0, lvl]

    flat, bsz, n_roi, c, h, w = roi_align_matrixnet(
        features, rois_np, aligned_height=4, aligned_width=4)
    flat = jax.block_until_ready(flat)

    assert flat.shape == (bsz * n_roi, c * h * w), flat.shape
    assert bool(jnp.all(jnp.isfinite(flat)))

    # cross-check against a direct numpy port of roi_align + avg_pool2d
    ref = _reference_forward([np.asarray(f) for f in features], rois_np,
                             aligned_height=4, aligned_width=4)
    np.testing.assert_allclose(np.asarray(flat), ref, rtol=5e-2, atol=5e-2)

    print("KERNEL_OK")
</pallas_src>

<mosaic_0001>
module attributes {stable_mosaic.version = 11 : i64} {
  func.func @_roi_matmul_kernel(%arg0: i32, %arg1: memref<4x32xf32, #tpu.memory_space<vmem>>, %arg2: memref<32x72xf32, #tpu.memory_space<vmem>>, %arg3: memref<4x72xf32, #tpu.memory_space<vmem>>) attributes {dimension_semantics = [#tpu.dimension_semantics<arbitrary>], iteration_bounds = array<i64: 1>, scalar_prefetch = 0 : i64, scratch_operands = 0 : i64, tpu.core_type = #tpu.core_type<tc>, window_params = [{pipeline_mode = #tpu.pipeline_mode<synchronous>, transform_indices = @transform_0, window_bounds = array<i64: 4, 32>}, {pipeline_mode = #tpu.pipeline_mode<synchronous>, transform_indices = @transform_1, window_bounds = array<i64: 32, 72>}, {pipeline_mode = #tpu.pipeline_mode<synchronous>, transform_indices = @transform_2, window_bounds = array<i64: 4, 72>}]} {
    %c0 = arith.constant 0 : index
    %c0_0 = arith.constant 0 : index
    %0 = vector.load %arg1[%c0, %c0_0] : memref<4x32xf32, #tpu.memory_space<vmem>>, vector<4x32xf32>
    %c0_1 = arith.constant 0 : index
    %c0_2 = arith.constant 0 : index
    %1 = vector.load %arg2[%c0_1, %c0_2] : memref<32x72xf32, #tpu.memory_space<vmem>>, vector<32x72xf32>
    %cst = arith.constant dense<0.000000e+00> : vector<4x72xf32>
    %2 = tpu.matmul %0, %1, %cst {dimension_numbers = #tpu.dot_dimension_numbers<[1], [0], [0], [1], [0, 0, 1, 1], [], []>} : vector<4x32xf32>, vector<32x72xf32>, vector<4x72xf32> -> vector<4x72xf32>
    %c0_3 = arith.constant 0 : index
    %c0_4 = arith.constant 0 : index
    %3 = vector.load %arg3[%c0_3, %c0_4] : memref<4x72xf32, #tpu.memory_space<vmem>>, vector<4x72xf32>
    tpu.vector_store %arg3[%c0_3, %c0_4], %2 {strides = array<i32>} : memref<4x72xf32, #tpu.memory_space<vmem>>, vector<4x72xf32>,
    return
  }
  func.func @transform_0(%arg0: i32) -> (i32, i32) {
    %c0_i32 = arith.constant 0 : i32
    %c0_i32_0 = arith.constant 0 : i32
    %c0_i32_1 = arith.constant 0 : i32
    return %c0_i32, %c0_i32_0 : i32, i32
  }
  func.func @transform_1(%arg0: i32) -> (i32, i32) {
    %c0_i32 = arith.constant 0 : i32
    %c0_i32_0 = arith.constant 0 : i32
    %c0_i32_1 = arith.constant 0 : i32
    return %c0_i32, %c0_i32_0 : i32, i32
  }
  func.func @transform_2(%arg0: i32) -> (i32, i32) {
    %c0_i32 = arith.constant 0 : i32
    %c0_i32_0 = arith.constant 0 : i32
    %c0_i32_1 = arith.constant 0 : i32
    return %c0_i32, %c0_i32_0 : i32, i32
  }
}

</mosaic_0001>

<llo_original>
// kernel: tpu_custom_call.1
$region0: #{tpu_custom_call.1}
  #allocation0 [shape = 'u32[]', space=smem, size = 0x4, offset = 0x4, fixed_abs, tag = 'smem constant byte address 0x4 - core index']
  #allocation1 [shape = 'u32[72,128]{1,0:T(1,128)}', space=vmem, size = 0x9000, scoped, tag = 'internal scratch']
  %s0 = inlined_call_operand.hbm [shape: f32[4,32], index: 0, kind: input, shape index: {}]
  %s1 = inlined_call_operand.hbm [shape: f32[32,72], index: 1, kind: input, shape index: {}]
  %s2 = inlined_call_operand.hbm [shape: f32[4,72], index: 2, kind: output, shape index: {}]
  %s3 = sld [smem:[#allocation0]]
  $region26: #{tpu_custom_call.1} parent=0
    _
  %s5 = ssub.s32 1, %s3
  %s6 = scalar_select 0, %s5, %s3
  $region1: #{tpu_custom_call.1} parent=0
    #allocation2 [shape = 'u8[2048]{0}', space=vmem, size = 0x800, scoped, tag = 'input window, operand 0, single buffered']
    #allocation3 [shape = 's32[1]{0}', space=sflag, size = 0x4, scoped, tag = 'scoped memory for tpu_custom_call.1']
    #allocation4 [shape = 's32[1]{0}', space=sflag, size = 0x4, scoped, tag = 'scoped memory for tpu_custom_call.1']
    #allocation5 [shape = 'u8[16384]{0}', space=vmem, size = 0x4000, scoped, tag = 'input window, operand 1, single buffered']
    #allocation6 [shape = 's32[1]{0}', space=sflag, size = 0x4, scoped, tag = 'scoped memory for tpu_custom_call.1']
    #allocation7 [shape = 'u8[2048]{0}', space=vmem, size = 0x800, scoped, tag = 'output window, operand 0, single buffered']
    %7 = vsyncpa [#allocation3], 0
    %8 = vsyncpa [#allocation6], 0
    %9 = vsyncpa [#allocation4], 0
    // Predicated region
    $region2: #{tpu_custom_call.1} parent=1 // pred_check
      _
    $region3: #{tpu_custom_call.1} parent=1 // pred_check_branch
      %11 = sbr.rel (0) target = $region5
    $region4: #{tpu_custom_call.1} parent=1 // pred_region
      %13 = vsyncadd [#allocation3], 0
      %s15 = sshll.u32 %s0, 4
      %s16 = int_to_ptr.hbm [resolvable:$true] %s15
      %s17 = sshll.u32 [#allocation2], 4
      %s18 = int_to_ptr.vmem [resolvable:$true] %s17
      %20 = dma.hbm_to_vmem [thread:$0]  %s16, 64, %s18, [#allocation3]
    $region5: #{tpu_custom_call.1} parent=1 // pred_fallthru
      _
    // Predicated region
    $region6: #{tpu_custom_call.1} parent=1 // pred_check
      _
    $region7: #{tpu_custom_call.1} parent=1 // pred_check_branch
      %22 = sbr.rel (0) target = $region9
    $region8: #{tpu_custom_call.1} parent=1 // pred_region
      %24 = vsyncadd [#allocation6], 0
      %s25 = sshll.u32 %s1, 4
      %s26 = int_to_ptr.hbm [resolvable:$true] %s25
      %s27 = sshll.u32 [#allocation5], 4
      %s28 = int_to_ptr.vmem [resolvable:$true] %s27
      %33 = dma.hbm_to_vmem [thread:$0]  %s26, 512, %s28, [#allocation6], 128, 128, 8
    $region9: #{tpu_custom_call.1} parent=1 // pred_fallthru
      _
    // Predicated region
    $region10: #{tpu_custom_call.1} parent=1 // pred_check
      _
    $region11: #{tpu_custom_call.1} parent=1 // pred_check_branch
      %35 = sbr.rel (0) target = $region13
    $region12: #{tpu_custom_call.1} parent=1 // pred_region
      %37 = dma.done [#allocation3], 64
    $region13: #{tpu_custom_call.1} parent=1 // pred_fallthru
      _
    // Predicated region
    $region14: #{tpu_custom_call.1} parent=1 // pred_check
      _
    $region15: #{tpu_custom_call.1} parent=1 // pred_check_branch
      %39 = sbr.rel (0) target = $region17
    $region16: #{tpu_custom_call.1} parent=1 // pred_region
      %41 = dma.done [#allocation6], 512
    $region17: #{tpu_custom_call.1} parent=1 // pred_fallthru
      _
    %v42 = vld [vmem:[#allocation2] sm:$0xf]
    %v43 = vld [vmem:[#allocation5] sm:$0xff]
    %v44 = vld [vmem:[#allocation5 + $0x8] sm:$0xff]
    %v45 = vld [vmem:[#allocation5 + $0x10] sm:$0xff]
    %v46 = vld [vmem:[#allocation5 + $0x18] sm:$0xff]
    %vm47 = vcmask 261120
    %v49 = vsel %vm47, %v42, 0
    %51 = vmatpush.msra.mxu0 0.0
    %52 = vmatpush.msra.mxu0 0.0
    %53 = vmatpush.msra.mxu0 0.0
    %54 = vmatpush.msra.mxu0 0.0
    %55 = vmatpush.msra.mxu0 0.0
    %56 = vmatpush.msra.mxu0 0.0
    %57 = vmatpush.msra.mxu0 0.0
    %58 = vmatpush.msra.mxu0 0.0
    %59 = vmatpush.msra.mxu0 0.0
    %60 = vmatpush.msra.mxu0 0.0
    %61 = vmatpush.msra.mxu0 0.0
    %62 = vmatpush.msra.mxu0 0.0
    %63 = vmatpush.msra.mxu0 %v46
    %64 = vmatpush.msra.mxu0 %v45
    %65 = vmatpush.msra.mxu0 %v44
    %66 = vmatpush.msra.mxu0 %v43
    %67 = vmatmul.f32.gmra.mxu0 %v49
    %v68 = vpop.f32.mrf.mxu0
    %v69 = vadd.f32 0.0, %v68
    %70 = vdwg.mxu0
    %vm71 = vcmask 584704
    %72 = vst.msk [vmem:[#allocation7] sm:$0xf] %vm71, %v69
    // Predicated region
    $region18: #{tpu_custom_call.1} parent=1 // pred_check
      _
    $region19: #{tpu_custom_call.1} parent=1 // pred_check_branch
      %74 = sbr.rel (0) target = $region21
    $region20: #{tpu_custom_call.1} parent=1 // pred_region
      %76 = vsyncadd [#allocation4], 0
      %s78 = sshll.u32 [#allocation7], 4
      %s79 = int_to_ptr.vmem [resolvable:$true] %s78
      %s80 = sshll.u32 %s2, 4
      %s81 = int_to_ptr.hbm [resolvable:$true] %s80
      %83 = dma.vmem_to_hbm [thread:$0]  %s79, 64, %s81, [#allocation4]
    $region21: #{tpu_custom_call.1} parent=1 // pred_fallthru
      _
    // Predicated region
    $region22: #{tpu_custom_call.1} parent=1 // pred_check
      _
    $region23: #{tpu_custom_call.1} parent=1 // pred_check_branch
      %85 = sbr.rel (0) target = $region25
    $region24: #{tpu_custom_call.1} parent=1 // pred_region
      %87 = dma.done [#allocation4], 64
    $region25: #{tpu_custom_call.1} parent=1 // pred_fallthru
      _
    %88 = vsyncpa [#allocation3], 1
    %89 = vsyncpa [#allocation6], 1
    %90 = vsyncpa [#allocation4], 1

</llo_original>
